<compile_context>
chip_gen: v5e
topology: v5e:2x2
jax: 0.10.0
libtpu: 0.0.40
codegen_flags: <defaults>
</compile_context>

<pallas_src>
import functools

import jax
import jax.numpy as jnp
from jax.experimental import pallas as pl
from jax.experimental.pallas import tpu as pltpu

_LANE = 128
_SUBLANE = 8


def _round_up(x: int, m: int) -> int:
    return ((x + m - 1) // m) * m


def _pick_batch_tile(B: int, block_b: int) -> int:
    """Largest sublane-aligned tile <= block_b that doesn't over-pad the batch."""
    b8 = _round_up(max(B, 1), _SUBLANE)
    tb = min(_round_up(block_b, _SUBLANE), b8)
    while tb > _SUBLANE:
        waste = _round_up(b8, tb) - b8
        if waste * 8 <= b8:          # <= ~12.5% padded rows
            break
        tb = _round_up(tb // 2, _SUBLANE)
    return tb


def mlp_kernel(x_ref, w1_ref, b1_ref, w2_ref, b2_ref, w3_ref, b3_ref, o_ref,
               *, n_classes: int):
    """One batch tile: relu(x@W1+b1) -> relu(.@W2+b2) -> softmax(.@W3+b3)."""
    x = x_ref[...]

    h1 = jnp.dot(x, w1_ref[...], preferred_element_type=jnp.float32) + b1_ref[...]
    h1 = jnp.maximum(h1, 0.0)

    h2 = jnp.dot(h1, w2_ref[...], preferred_element_type=jnp.float32) + b2_ref[...]
    h2 = jnp.maximum(h2, 0.0)

    logits = jnp.dot(h2, w3_ref[...], preferred_element_type=jnp.float32) + b3_ref[...]

    # Mask padded class lanes so they do not perturb the softmax reduction.
    col = jax.lax.broadcasted_iota(jnp.int32, logits.shape, dimension=1)
    logits = jnp.where(col < n_classes, logits, jnp.float32(-1e30))

    # Numerically stable softmax over the class axis (exact divide so rows
    # sum to 1 to float32 precision).
    m = jnp.max(logits, axis=1, keepdims=True)
    e = jnp.exp(logits - m)
    s = jnp.sum(e, axis=1, keepdims=True)
    o_ref[...] = e / s


def pad_params(w1, b1, w2, b2, w3, b3):
    """Pad static weights/biases ONCE to kernel-friendly shapes.

    Input axis -> multiple of 8, hidden -> multiple of 128, classes -> multiple of 8.
    Padding is zeros, which keeps padded hidden lanes exactly zero through ReLU.
    """
    in_dim, H = w1.shape
    C = w3.shape[1]
    IN_P = _round_up(in_dim, _SUBLANE)
    H_P = _round_up(H, _LANE)
    C_P = _round_up(C, _SUBLANE)

    f32 = jnp.float32
    w1_p = jnp.zeros((IN_P, H_P), f32).at[:in_dim, :H].set(w1.astype(f32))
    b1_p = jnp.zeros((1, H_P), f32).at[:, :H].set(b1.astype(f32))
    w2_p = jnp.zeros((H_P, H_P), f32).at[:H, :H].set(w2.astype(f32))
    b2_p = jnp.zeros((1, H_P), f32).at[:, :H].set(b2.astype(f32))
    w3_p = jnp.zeros((H_P, C_P), f32).at[:H, :C].set(w3.astype(f32))
    b3_p = jnp.zeros((1, C_P), f32).at[:, :C].set(b3.astype(f32))
    return (w1_p, b1_p, w2_p, b2_p, w3_p, b3_p), (in_dim, H, C)


def mlp_forward(x, padded_params, dims, *, block_b: int = 2048):
    """Pad only x per call, run the batch-tiled Pallas kernel, slice back."""
    w1_p, b1_p, w2_p, b2_p, w3_p, b3_p = padded_params
    in_dim, H, C = dims
    IN_P, H_P = w1_p.shape
    C_P = w3_p.shape[1]

    B = x.shape[0]
    TB = _pick_batch_tile(B, block_b)
    B_P = _round_up(B, TB)
    grid = (B_P // TB,)

    f32 = jnp.float32
    x_p = jnp.zeros((B_P, IN_P), f32).at[:B, :in_dim].set(x.astype(f32))

    # Advisory cost hint (actually-executed, padded sizes).
    flops = 2 * B_P * (IN_P * H_P + H_P * H_P + H_P * C_P)
    transcendentals = B_P * C_P                                   # exp per (padded) logit
    bytes_accessed = 4 * (B_P * IN_P + IN_P * H_P + H_P * H_P + H_P * C_P
                          + 2 * H_P + C_P + B_P * C_P)
    cost = pl.CostEstimate(flops=flops,
                           transcendentals=transcendentals,
                           bytes_accessed=bytes_accessed)

    # Batch-tiled grid: x / out blocks move per grid step; weights & biases are
    # full, grid-invariant VMEM residents.  Blocks whose last dim equals the
    # full (small) array dim are legal, so IN_P=8 / C_P=8 need no lane padding.
    grid_spec = pltpu.PrefetchScalarGridSpec(
        num_scalar_prefetch=0,
        grid=grid,
        in_specs=[
            pl.BlockSpec((TB, IN_P), lambda i: (i, 0)),      # x tile
            pl.BlockSpec((IN_P, H_P), lambda i: (0, 0)),     # w1
            pl.BlockSpec((1, H_P), lambda i: (0, 0)),        # b1
            pl.BlockSpec((H_P, H_P), lambda i: (0, 0)),      # w2
            pl.BlockSpec((1, H_P), lambda i: (0, 0)),        # b2
            pl.BlockSpec((H_P, C_P), lambda i: (0, 0)),      # w3
            pl.BlockSpec((1, C_P), lambda i: (0, 0)),        # b3
        ],
        out_specs=pl.BlockSpec((TB, C_P), lambda i: (i, 0)),  # probability slab
    )

    out_padded = pl.pallas_call(
        functools.partial(mlp_kernel, n_classes=C),
        out_shape=jax.ShapeDtypeStruct((B_P, C_P), f32),
        grid_spec=grid_spec,
        compiler_params=pltpu.CompilerParams(
            dimension_semantics=("parallel",),   # shard batch tiles across TCs (v7x)
        ),
        cost_estimate=cost,
    )(x_p, w1_p, b1_p, w2_p, b2_p, w3_p, b3_p)

    return out_padded[:B, :C]


def init_params(key, input_dim=4, hidden=50, n_classes=3):
    """Deterministic synthetic params; mimics PyTorch's U(-1/sqrt(fan_in), +) init."""
    ks = jax.random.split(key, 6)

    def uniform(k, shape, fan_in):
        bound = 1.0 / jnp.sqrt(jnp.float32(fan_in))
        return jax.random.uniform(k, shape, jnp.float32, -bound, bound)

    w1 = uniform(ks[0], (input_dim, hidden), input_dim)
    b1 = uniform(ks[1], (1, hidden), input_dim)
    w2 = uniform(ks[2], (hidden, hidden), hidden)
    b2 = uniform(ks[3], (1, hidden), hidden)
    w3 = uniform(ks[4], (hidden, n_classes), hidden)
    b3 = uniform(ks[5], (1, n_classes), hidden)
    return w1, b1, w2, b2, w3, b3


def reference_forward(x, w1, b1, w2, b2, w3, b3):
    h1 = jnp.maximum(x @ w1 + b1, 0.0)
    h2 = jnp.maximum(h1 @ w2 + b2, 0.0)
    logits = h2 @ w3 + b3
    return jax.nn.softmax(logits, axis=1)


if __name__ == "__main__":
    key = jax.random.PRNGKey(0)
    k_x, k_p = jax.random.split(key)

    batch, input_dim = 8, 4
    x = jax.random.normal(k_x, (batch, input_dim), dtype=jnp.float32)
    params = init_params(k_p, input_dim=input_dim, hidden=50, n_classes=3)

    padded_params, dims = pad_params(*params)   # one-time static padding

    out = mlp_forward(x, padded_params, dims)
    out = jax.block_until_ready(out)

    ref = reference_forward(x, *params)
    assert out.shape == (batch, 3), f"bad output shape {out.shape}"
    assert jnp.allclose(out, ref, atol=1e-5, rtol=1e-4), "mismatch vs reference"
    assert jnp.allclose(jnp.sum(out, axis=1), 1.0, atol=1e-5), "softmax rows must sum to 1"

    print("KERNEL_OK")
</pallas_src>

<mosaic_0001>
module attributes {stable_mosaic.version = 11 : i64} {
  func.func @mlp_kernel(%arg0: i32, %arg1: memref<8x8xf32, #tpu.memory_space<vmem>>, %arg2: memref<8x128xf32, #tpu.memory_space<vmem>>, %arg3: memref<1x128xf32, #tpu.memory_space<vmem>>, %arg4: memref<128x128xf32, #tpu.memory_space<vmem>>, %arg5: memref<1x128xf32, #tpu.memory_space<vmem>>, %arg6: memref<128x8xf32, #tpu.memory_space<vmem>>, %arg7: memref<1x8xf32, #tpu.memory_space<vmem>>, %arg8: memref<8x8xf32, #tpu.memory_space<vmem>>) attributes {dimension_semantics = [#tpu.dimension_semantics<parallel>], iteration_bounds = array<i64: 1>, scalar_prefetch = 0 : i64, scratch_operands = 0 : i64, tpu.core_type = #tpu.core_type<tc>, window_params = [{transform_indices = @transform_0, window_bounds = array<i64: 8, 8>}, {pipeline_mode = #tpu.pipeline_mode<synchronous>, transform_indices = @transform_1, window_bounds = array<i64: 8, 128>}, {pipeline_mode = #tpu.pipeline_mode<synchronous>, transform_indices = @transform_2, window_bounds = array<i64: 1, 128>}, {pipeline_mode = #tpu.pipeline_mode<synchronous>, transform_indices = @transform_3, window_bounds = array<i64: 128, 128>}, {pipeline_mode = #tpu.pipeline_mode<synchronous>, transform_indices = @transform_4, window_bounds = array<i64: 1, 128>}, {pipeline_mode = #tpu.pipeline_mode<synchronous>, transform_indices = @transform_5, window_bounds = array<i64: 128, 8>}, {pipeline_mode = #tpu.pipeline_mode<synchronous>, transform_indices = @transform_6, window_bounds = array<i64: 1, 8>}, {transform_indices = @transform_7, window_bounds = array<i64: 8, 8>}]} {
    %c0 = arith.constant 0 : index
    %c0_0 = arith.constant 0 : index
    %0 = vector.load %arg1[%c0, %c0_0] : memref<8x8xf32, #tpu.memory_space<vmem>>, vector<8x8xf32>
    %c0_1 = arith.constant 0 : index
    %c0_2 = arith.constant 0 : index
    %1 = vector.load %arg2[%c0_1, %c0_2] : memref<8x128xf32, #tpu.memory_space<vmem>>, vector<8x128xf32>
    %cst = arith.constant dense<0.000000e+00> : vector<8x128xf32>
    %2 = tpu.matmul %0, %1, %cst {dimension_numbers = #tpu.dot_dimension_numbers<[1], [0], [0], [1], [0, 0, 1, 1], [], []>} : vector<8x8xf32>, vector<8x128xf32>, vector<8x128xf32> -> vector<8x128xf32>
    %c0_3 = arith.constant 0 : index
    %c0_4 = arith.constant 0 : index
    %3 = vector.load %arg3[%c0_3, %c0_4] : memref<1x128xf32, #tpu.memory_space<vmem>>, vector<1x128xf32>
    %4 = vector.broadcast %3 : vector<1x128xf32> to vector<8x128xf32>
    %5 = arith.addf %2, %4 : vector<8x128xf32>
    %cst_5 = arith.constant 0.000000e+00 : f32
    %6 = vector.broadcast %cst_5 : f32 to vector<8x128xf32>
    %7 = arith.maximumf %5, %6 : vector<8x128xf32>
    %c0_6 = arith.constant 0 : index
    %c0_7 = arith.constant 0 : index
    %8 = vector.load %arg4[%c0_6, %c0_7] : memref<128x128xf32, #tpu.memory_space<vmem>>, vector<128x128xf32>
    %cst_8 = arith.constant dense<0.000000e+00> : vector<8x128xf32>
    %9 = tpu.matmul %7, %8, %cst_8 {dimension_numbers = #tpu.dot_dimension_numbers<[1], [0], [0], [1], [0, 0, 1, 1], [], []>} : vector<8x128xf32>, vector<128x128xf32>, vector<8x128xf32> -> vector<8x128xf32>
    %c0_9 = arith.constant 0 : index
    %c0_10 = arith.constant 0 : index
    %10 = vector.load %arg5[%c0_9, %c0_10] : memref<1x128xf32, #tpu.memory_space<vmem>>, vector<1x128xf32>
    %11 = vector.broadcast %10 : vector<1x128xf32> to vector<8x128xf32>
    %12 = arith.addf %9, %11 : vector<8x128xf32>
    %cst_11 = arith.constant 0.000000e+00 : f32
    %13 = vector.broadcast %cst_11 : f32 to vector<8x128xf32>
    %14 = arith.maximumf %12, %13 : vector<8x128xf32>
    %c0_12 = arith.constant 0 : index
    %c0_13 = arith.constant 0 : index
    %15 = vector.load %arg6[%c0_12, %c0_13] : memref<128x8xf32, #tpu.memory_space<vmem>>, vector<128x8xf32>
    %cst_14 = arith.constant dense<0.000000e+00> : vector<8x8xf32>
    %16 = tpu.matmul %14, %15, %cst_14 {dimension_numbers = #tpu.dot_dimension_numbers<[1], [0], [0], [1], [0, 0, 1, 1], [], []>} : vector<8x128xf32>, vector<128x8xf32>, vector<8x8xf32> -> vector<8x8xf32>
    %c0_15 = arith.constant 0 : index
    %c0_16 = arith.constant 0 : index
    %17 = vector.load %arg7[%c0_15, %c0_16] : memref<1x8xf32, #tpu.memory_space<vmem>>, vector<1x8xf32>
    %18 = vector.broadcast %17 : vector<1x8xf32> to vector<8x8xf32>
    %19 = arith.addf %16, %18 : vector<8x8xf32>
    %20 = tpu.iota {dimensions = array<i32: 1>} : vector<8x8xi32>
    %c3_i32 = arith.constant 3 : i32
    %21 = vector.broadcast %c3_i32 : i32 to vector<8x8xi32>
    %22 = arith.cmpi slt, %20, %21 : vector<8x8xi32>
    %cst_17 = arith.constant -1.000000e+30 : f32
    %23 = vector.broadcast %cst_17 : f32 to vector<8x8xf32>
    %24 = arith.select %22, %19, %23 : vector<8x8xi1>, vector<8x8xf32>
    %cst_18 = arith.constant dense<0xFF800000> : vector<8xf32>
    %25 = vector.multi_reduction <maximumf>, %24, %cst_18 [1] : vector<8x8xf32> to vector<8xf32>
    %26 = vector.shape_cast %25 : vector<8xf32> to vector<8x1xf32>
    %27 = vector.broadcast %26 : vector<8x1xf32> to vector<8x8xf32>
    %28 = arith.subf %24, %27 : vector<8x8xf32>
    %29 = math.exp %28 : vector<8x8xf32>
    %cst_19 = arith.constant dense<0.000000e+00> : vector<8xf32>
    %30 = vector.multi_reduction <add>, %29, %cst_19 [1] : vector<8x8xf32> to vector<8xf32>
    %31 = vector.shape_cast %30 : vector<8xf32> to vector<8x1xf32>
    %32 = vector.broadcast %31 : vector<8x1xf32> to vector<8x8xf32>
    %33 = arith.divf %29, %32 : vector<8x8xf32>
    %c0_20 = arith.constant 0 : index
    %c0_21 = arith.constant 0 : index
    %34 = vector.load %arg8[%c0_20, %c0_21] : memref<8x8xf32, #tpu.memory_space<vmem>>, vector<8x8xf32>
    tpu.vector_store %arg8[%c0_20, %c0_21], %33 {strides = array<i32>} : memref<8x8xf32, #tpu.memory_space<vmem>>, vector<8x8xf32>,
    return
  }
  func.func @transform_0(%arg0: i32) -> (i32, i32) {
    %c0_i32 = arith.constant 0 : i32
    %c0_i32_0 = arith.constant 0 : i32
    return %arg0, %c0_i32 : i32, i32
  }
  func.func @transform_1(%arg0: i32) -> (i32, i32) {
    %c0_i32 = arith.constant 0 : i32
    %c0_i32_0 = arith.constant 0 : i32
    %c0_i32_1 = arith.constant 0 : i32
    return %c0_i32, %c0_i32_0 : i32, i32
  }
  func.func @transform_2(%arg0: i32) -> (i32, i32) {
    %c0_i32 = arith.constant 0 : i32
    %c0_i32_0 = arith.constant 0 : i32
    %c0_i32_1 = arith.constant 0 : i32
    return %c0_i32, %c0_i32_0 : i32, i32
  }
  func.func @transform_3(%arg0: i32) -> (i32, i32) {
    %c0_i32 = arith.constant 0 : i32
    %c0_i32_0 = arith.constant 0 : i32
    %c0_i32_1 = arith.constant 0 : i32
    return %c0_i32, %c0_i32_0 : i32, i32
  }
  func.func @transform_4(%arg0: i32) -> (i32, i32) {
    %c0_i32 = arith.constant 0 : i32
    %c0_i32_0 = arith.constant 0 : i32
    %c0_i32_1 = arith.constant 0 : i32
    return %c0_i32, %c0_i32_0 : i32, i32
  }
  func.func @transform_5(%arg0: i32) -> (i32, i32) {
    %c0_i32 = arith.constant 0 : i32
    %c0_i32_0 = arith.constant 0 : i32
    %c0_i32_1 = arith.constant 0 : i32
    return %c0_i32, %c0_i32_0 : i32, i32
  }
  func.func @transform_6(%arg0: i32) -> (i32, i32) {
    %c0_i32 = arith.constant 0 : i32
    %c0_i32_0 = arith.constant 0 : i32
    %c0_i32_1 = arith.constant 0 : i32
    return %c0_i32, %c0_i32_0 : i32, i32
  }
  func.func @transform_7(%arg0: i32) -> (i32, i32) {
    %c0_i32 = arith.constant 0 : i32
    %c0_i32_0 = arith.constant 0 : i32
    return %arg0, %c0_i32 : i32, i32
  }
}

</mosaic_0001>

<llo_original>
// kernel: tpu_custom_call.1
$region0: #{tpu_custom_call.1}
  #allocation0 [shape = 'u32[]', space=smem, size = 0x4, offset = 0x4, fixed_abs, tag = 'smem constant byte address 0x4 - core index']
  #allocation1 [shape = 'u32[72,128]{1,0:T(1,128)}', space=vmem, size = 0x9000, scoped, tag = 'internal scratch']
  %s0 = inlined_call_operand.vmem [shape: f32[8,8], index: 0, kind: input, shape index: {}]
  %s1 = inlined_call_operand.hbm [shape: f32[8,128], index: 1, kind: input, shape index: {}]
  %s2 = inlined_call_operand.vmem [shape: f32[1,128], index: 2, kind: input, shape index: {}]
  %s3 = inlined_call_operand.vmem [shape: f32[128,128], index: 3, kind: input, shape index: {}]
  %s4 = inlined_call_operand.vmem [shape: f32[1,128], index: 4, kind: input, shape index: {}]
  %s5 = inlined_call_operand.vmem [shape: f32[128,8], index: 5, kind: input, shape index: {}]
  %s6 = inlined_call_operand.vmem [shape: f32[1,8], index: 6, kind: input, shape index: {}]
  %s7 = inlined_call_operand.hbm [shape: f32[8,8], index: 7, kind: output, shape index: {}]
  %s8 = sld [smem:[#allocation0]]
  $region42: #{tpu_custom_call.1} parent=0
    _
  %s10 = ssub.s32 1, %s8
  %s11 = scalar_select 0, %s10, %s8
  $region1: #{tpu_custom_call.1} parent=0
    #allocation2 [shape = 'u8[4096]{0}', space=vmem, size = 0x1000, scoped, tag = 'input window, operand 1, single buffered']
    #allocation3 [shape = 's32[1]{0}', space=sflag, size = 0x4, scoped, tag = 'scoped memory for tpu_custom_call.1']
    #allocation4 [shape = 's32[1]{0}', space=sflag, size = 0x4, scoped, tag = 'scoped memory for tpu_custom_call.1']
    #allocation5 [shape = 'u8[4096]{0}', space=vmem, size = 0x1000, scoped, tag = 'output window, operand 0, single buffered']
    %12 = vsyncpa [#allocation3], 0
    %13 = vsyncpa [#allocation4], 0
    // Predicated region
    $region2: #{tpu_custom_call.1} parent=1 // pred_check
      _
    $region3: #{tpu_custom_call.1} parent=1 // pred_check_branch
      %15 = sbr.rel (0) target = $region5
    $region4: #{tpu_custom_call.1} parent=1 // pred_region
      _
    $region5: #{tpu_custom_call.1} parent=1 // pred_fallthru
      _
    // Predicated region
    $region6: #{tpu_custom_call.1} parent=1 // pred_check
      _
    $region7: #{tpu_custom_call.1} parent=1 // pred_check_branch
      %17 = sbr.rel (0) target = $region9
    $region8: #{tpu_custom_call.1} parent=1 // pred_region
      %19 = vsyncadd [#allocation3], 0
      %s21 = sshll.u32 %s1, 4
      %s22 = int_to_ptr.hbm [resolvable:$true] %s21
      %s23 = sshll.u32 [#allocation2], 4
      %s24 = int_to_ptr.vmem [resolvable:$true] %s23
      %26 = dma.hbm_to_vmem [thread:$0]  %s22, 128, %s24, [#allocation3]
    $region9: #{tpu_custom_call.1} parent=1 // pred_fallthru
      _
    // Predicated region
    $region10: #{tpu_custom_call.1} parent=1 // pred_check
      _
    $region11: #{tpu_custom_call.1} parent=1 // pred_check_branch
      %28 = sbr.rel (0) target = $region13
    $region12: #{tpu_custom_call.1} parent=1 // pred_region
      _
    $region13: #{tpu_custom_call.1} parent=1 // pred_fallthru
      _
    // Predicated region
    $region14: #{tpu_custom_call.1} parent=1 // pred_check
      _
    $region15: #{tpu_custom_call.1} parent=1 // pred_check_branch
      %30 = sbr.rel (0) target = $region17
    $region16: #{tpu_custom_call.1} parent=1 // pred_region
      _
    $region17: #{tpu_custom_call.1} parent=1 // pred_fallthru
      _
    // Predicated region
    $region18: #{tpu_custom_call.1} parent=1 // pred_check
      _
    $region19: #{tpu_custom_call.1} parent=1 // pred_check_branch
      %32 = sbr.rel (0) target = $region21
    $region20: #{tpu_custom_call.1} parent=1 // pred_region
      _
    $region21: #{tpu_custom_call.1} parent=1 // pred_fallthru
      _
    // Predicated region
    $region22: #{tpu_custom_call.1} parent=1 // pred_check
      _
    $region23: #{tpu_custom_call.1} parent=1 // pred_check_branch
      %34 = sbr.rel (0) target = $region25
    $region24: #{tpu_custom_call.1} parent=1 // pred_region
      _
    $region25: #{tpu_custom_call.1} parent=1 // pred_fallthru
      _
    // Predicated region
    $region26: #{tpu_custom_call.1} parent=1 // pred_check
      _
    $region27: #{tpu_custom_call.1} parent=1 // pred_check_branch
      %36 = sbr.rel (0) target = $region29
    $region28: #{tpu_custom_call.1} parent=1 // pred_region
      _
    $region29: #{tpu_custom_call.1} parent=1 // pred_fallthru
      _
    // Predicated region
    $region30: #{tpu_custom_call.1} parent=1 // pred_check
      _
    $region31: #{tpu_custom_call.1} parent=1 // pred_check_branch
      %38 = sbr.rel (0) target = $region33
    $region32: #{tpu_custom_call.1} parent=1 // pred_region
      %40 = dma.done [#allocation3], 128
    $region33: #{tpu_custom_call.1} parent=1 // pred_fallthru
      _
    %v41 = vld [vmem:[%s0] sm:$0xff]
    %v42 = vld [vmem:[#allocation2] sm:$0xff]
    %v43 = vld [vmem:[%s2] sm:$0x1]
    %v45 = vperm.slane %v43, 0
    %vm47 = vcmask 64512
    %v49 = vsel %vm47, %v41, 0
    %51 = vmatpush.msra.mxu0 0.0
    %52 = vmatpush.msra.mxu0 0.0
    %53 = vmatpush.msra.mxu0 0.0
    %54 = vmatpush.msra.mxu0 0.0
    %55 = vmatpush.msra.mxu0 0.0
    %56 = vmatpush.msra.mxu0 0.0
    %57 = vmatpush.msra.mxu0 0.0
    %58 = vmatpush.msra.mxu0 0.0
    %59 = vmatpush.msra.mxu0 0.0
    %60 = vmatpush.msra.mxu0 0.0
    %61 = vmatpush.msra.mxu0 0.0
    %62 = vmatpush.msra.mxu0 0.0
    %63 = vmatpush.msra.mxu0 0.0
    %64 = vmatpush.msra.mxu0 0.0
    %65 = vmatpush.msra.mxu0 0.0
    %66 = vmatpush.msra.mxu0 %v42
    %67 = vmatmul.f32.gmra.mxu0 %v49
    %v68 = vpop.f32.mrf.mxu0
    %v69 = vadd.f32 %v45, %v68
    %70 = vdwg.mxu0
    %v71 = vmax.f32 %v69, 0.0
    %v72 = vld [vmem:[%s3] sm:$0xff]
    %v73 = vld [vmem:[%s3 + $0x8] sm:$0xff]
    %v74 = vld [vmem:[%s3 + $0x10] sm:$0xff]
    %v75 = vld [vmem:[%s3 + $0x18] sm:$0xff]
    %v76 = vld [vmem:[%s3 + $0x20] sm:$0xff]
    %v77 = vld [vmem:[%s3 + $0x28] sm:$0xff]
    %v78 = vld [vmem:[%s3 + $0x30] sm:$0xff]
    %v79 = vld [vmem:[%s3 + $0x38] sm:$0xff]
    %v80 = vld [vmem:[%s3 + $0x40] sm:$0xff]
    %v81 = vld [vmem:[%s3 + $0x48] sm:$0xff]
    %v82 = vld [vmem:[%s3 + $0x50] sm:$0xff]
    %v83 = vld [vmem:[%s3 + $0x58] sm:$0xff]
    %v84 = vld [vmem:[%s3 + $0x60] sm:$0xff]
    %v85 = vld [vmem:[%s3 + $0x68] sm:$0xff]
    %v86 = vld [vmem:[%s3 + $0x70] sm:$0xff]
    %v87 = vld [vmem:[%s3 + $0x78] sm:$0xff]
    %v88 = vld [vmem:[%s4] sm:$0x1]
    %v90 = vperm.slane %v88, 0
    %92 = vmatpush.msra.mxu0 %v87
    %93 = vmatpush.msra.mxu0 %v86
    %94 = vmatpush.msra.mxu0 %v85
    %95 = vmatpush.msra.mxu0 %v84
    %96 = vmatpush.msra.mxu0 %v83
    %97 = vmatpush.msra.mxu0 %v82
    %98 = vmatpush.msra.mxu0 %v81
    %99 = vmatpush.msra.mxu0 %v80
    %100 = vmatpush.msra.mxu0 %v79
    %101 = vmatpush.msra.mxu0 %v78
    %102 = vmatpush.msra.mxu0 %v77
    %103 = vmatpush.msra.mxu0 %v76
    %104 = vmatpush.msra.mxu0 %v75
    %105 = vmatpush.msra.mxu0 %v74
    %106 = vmatpush.msra.mxu0 %v73
    %107 = vmatpush.msra.mxu0 %v72
    %108 = vmatmul.f32.gmra.mxu0 %v71
    %v109 = vpop.f32.mrf.mxu0
    %v110 = vadd.f32 %v90, %v109
    %111 = vdwg.mxu0
    %v112 = vmax.f32 %v110, 0.0
    %v113 = vld [vmem:[%s5] sm:$0xff]
    %v114 = vld [vmem:[%s5 + $0x8] sm:$0xff]
    %v115 = vld [vmem:[%s5 + $0x10] sm:$0xff]
    %v116 = vld [vmem:[%s5 + $0x18] sm:$0xff]
    %v117 = vld [vmem:[%s5 + $0x20] sm:$0xff]
    %v118 = vld [vmem:[%s5 + $0x28] sm:$0xff]
    %v119 = vld [vmem:[%s5 + $0x30] sm:$0xff]
    %v120 = vld [vmem:[%s5 + $0x38] sm:$0xff]
    %v121 = vld [vmem:[%s5 + $0x40] sm:$0xff]
    %v122 = vld [vmem:[%s5 + $0x48] sm:$0xff]
    %v123 = vld [vmem:[%s5 + $0x50] sm:$0xff]
    %v124 = vld [vmem:[%s5 + $0x58] sm:$0xff]
    %v125 = vld [vmem:[%s5 + $0x60] sm:$0xff]
    %v126 = vld [vmem:[%s5 + $0x68] sm:$0xff]
    %v127 = vld [vmem:[%s5 + $0x70] sm:$0xff]
    %v128 = vld [vmem:[%s5 + $0x78] sm:$0xff]
    %v129 = vld [vmem:[%s6] sm:$0x1]
    %v131 = vperm.slane %v129, 0
    %133 = vmatpush.msra.mxu0 %v128
    %134 = vmatpush.msra.mxu0 %v127
    %135 = vmatpush.msra.mxu0 %v126
    %136 = vmatpush.msra.mxu0 %v125
    %137 = vmatpush.msra.mxu0 %v124
    %138 = vmatpush.msra.mxu0 %v123
    %139 = vmatpush.msra.mxu0 %v122
    %140 = vmatpush.msra.mxu0 %v121
    %141 = vmatpush.msra.mxu0 %v120
    %142 = vmatpush.msra.mxu0 %v119
    %143 = vmatpush.msra.mxu0 %v118
    %144 = vmatpush.msra.mxu0 %v117
    %145 = vmatpush.msra.mxu0 %v116
    %146 = vmatpush.msra.mxu0 %v115
    %147 = vmatpush.msra.mxu0 %v114
    %148 = vmatpush.msra.mxu0 %v113
    %149 = vmatmul.f32.gmra.mxu0 %v112
    %v150 = vpop.f32.mrf.mxu0
    %v151 = vadd.f32 %v131, %v150
    %152 = vdwg.mxu0
    %v153 = vlaneseq
    %v154 = vand.u32 %v153, 127
    %vm155 = vcmp.lt.s32.totalorder %v154, 3
    %v156 = vsel %vm155, %v151, -1e+30
    %v157 = vsel %vm47, %v156, -inf
    %158 = vmax.xlane.f32.xlu0 %v157
    %v159 = vpop.xlane.xlu0 %158
    %v160 = vsub.f32 %v156, %v159
    %v161 = vmul.f32 %v160, 1.442695
    %v162 = vpow.pop %v161
    %v163 = vsel %vm47, %v162, 0.0
    %164 = vadd.xlane.f32.xlu0 %v163
    %v165 = vpop.xlane.xlu0 %164
    %v166 = vrcp.pop %v165
    %v167 = vmul.f32 %v165, %v166
    %v168 = vsub.f32 1.0, %v167
    %v169 = vmul.f32 %v166, %v168
    %v170 = vadd.f32 %v166, %v169
    %vm171 = vweird.f32 %v165
    %vm172 = vweird.f32 %v166
    %vm173 = vmor %vm171, %vm172
    %v174 = vsel %vm173, %v166, %v170
    %v175 = vand.u32 2147483647, %v165
    %vm176 = vcmp.eq.f32.partialorder %v175, 8.507059e+37
    %v177 = vand.u32 %v165, 2147483648
    %v178 = vor.u32 1.1754944e-38, %v177
    %v179 = vsel %vm176, %v178, %v174
    %v180 = vmul.f32 %v162, %v179
    %181 = vst.msk [vmem:[#allocation5] sm:$0xff] %vm47, %v180
    // Predicated region
    $region34: #{tpu_custom_call.1} parent=1 // pred_check
      _
    $region35: #{tpu_custom_call.1} parent=1 // pred_check_branch
      %183 = sbr.rel (0) target = $region37
    $region36: #{tpu_custom_call.1} parent=1 // pred_region
      %185 = vsyncadd [#allocation4], 0
      %s187 = sshll.u32 [#allocation5], 4
      %s188 = int_to_ptr.vmem [resolvable:$true] %s187
      %s189 = sshll.u32 %s7, 4
      %s190 = int_to_ptr.hbm [resolvable:$true] %s189
      %192 = dma.vmem_to_hbm [thread:$0]  %s188, 128, %s190, [#allocation4]
    $region37: #{tpu_custom_call.1} parent=1 // pred_fallthru
      _
    // Predicated region
    $region38: #{tpu_custom_call.1} parent=1 // pred_check
      _
    $region39: #{tpu_custom_call.1} parent=1 // pred_check_branch
      %194 = sbr.rel (0) target = $region41
    $region40: #{tpu_custom_call.1} parent=1 // pred_region
      %196 = dma.done [#allocation4], 128
    $region41: #{tpu_custom_call.1} parent=1 // pred_fallthru
      _
    %197 = vsyncpa [#allocation3], 1
    %198 = vsyncpa [#allocation4], 1

</llo_original>
